<compile_context>
chip_gen: v7x
topology: tpu7x:2x2x1
jax: 0.10.0
libtpu: 0.0.40
codegen_flags: <defaults>
</compile_context>

<pallas_src>
import functools
import math

import jax
import jax.numpy as jnp
from jax.experimental import pallas as pl
from jax.experimental.pallas import tpu as pltpu

HIDDEN = 128
OUT_PAD = 128          # fc3 output padded to a full lane width (lane-dense stores)
LN_EPS = 1e-5
TILE_B_MAX = 512       # rows per grid step (multiple of 8); sweep 512-1024


def _layernorm_mxu(h, ones, gamma, beta):
    """PyTorch LayerNorm (biased variance, eps inside rsqrt).

    Row statistics are computed as matmuls against a resident all-ones
    (HIDDEN, HIDDEN) matrix so they run on the MXU instead of XLU lane
    reductions, and arrive already broadcast across all 128 lanes.  Kept in
    f32 to protect the s2/D - mu^2 cancellation.
    """
    d = h.shape[-1]
    s1 = jnp.dot(h, ones, preferred_element_type=jnp.float32)
    s2 = jnp.dot(h * h, ones, preferred_element_type=jnp.float32)
    mu = s1 * (1.0 / d)
    var = jnp.maximum(s2 * (1.0 / d) - mu * mu, 0.0)
    return (h - mu) * jax.lax.rsqrt(var + LN_EPS) * gamma + beta


def dqn_kernel(x_ref,
               w1_ref, b1_ref, g1_ref, be1_ref,
               w2_ref, b2_ref, g2_ref, be2_ref,
               w3_ref, b3_ref, ones_ref,
               out_ref):
    # bf16 MXU operands for the three layer matmuls (native on v5e/v6e/v7x),
    # f32 accumulation; all LayerNorm / ReLU math stays in f32.
    x = x_ref[...].astype(jnp.bfloat16)
    ones = ones_ref[...]

    # fc1 -> ln1 -> relu
    h = jnp.dot(x, w1_ref[...], preferred_element_type=jnp.float32) + b1_ref[...]
    h = jnp.maximum(_layernorm_mxu(h, ones, g1_ref[...], be1_ref[...]), 0.0)

    # fc2 -> ln2 -> relu
    h = jnp.dot(h.astype(jnp.bfloat16), w2_ref[...],
                preferred_element_type=jnp.float32) + b2_ref[...]
    h = jnp.maximum(_layernorm_mxu(h, ones, g2_ref[...], be2_ref[...]), 0.0)

    # fc3 (output lanes padded to 128 -> unmasked, lane-dense stores; bf16
    # output halves the dominant HBM writeback stream)
    out = jnp.dot(h.astype(jnp.bfloat16), w3_ref[...],
                  preferred_element_type=jnp.float32) + b3_ref[...]
    out_ref[...] = out.astype(out_ref.dtype)


def _choose_tile(batch, tile_b_max):
    tile = min(tile_b_max, batch)
    tile = max(8, (tile // 8) * 8)
    # Ensure >=2 grid steps whenever the batch allows it so the "parallel"
    # batch axis shards across both TensorCores on v7x (no-op on v5e/v6e).
    if batch >= 16:
        half = max(8, ((batch + 1) // 2 + 7) // 8 * 8)
        tile = min(tile, half)
    return tile


@functools.partial(jax.jit, static_argnames=("out_size", "tile_b_max"))
def dqn_forward(x, prepared, *, out_size, tile_b_max=TILE_B_MAX):
    """x: (B, input_size) float32. prepared: dict from prepare_params."""
    B, in_size = x.shape

    # ---- batch tiling: tile_b rows per grid step, multiple of 8 sublanes ----
    tile_b = _choose_tile(B, tile_b_max)
    b_pad = pl.cdiv(B, tile_b) * tile_b
    if b_pad != B:
        x = jnp.pad(x, ((0, b_pad - B), (0, 0)))
    grid = (b_pad // tile_b,)

    args = (x,
            prepared["w1"], prepared["b1"], prepared["g1"], prepared["be1"],
            prepared["w2"], prepared["b2"], prepared["g2"], prepared["be2"],
            prepared["w3"], prepared["b3"], prepared["ones"])

    def _resident(a):
        # full-array block + constant index_map -> loaded once, stays in VMEM
        return pl.BlockSpec(a.shape, lambda i: (0,) * a.ndim)

    in_specs = [pl.BlockSpec((tile_b, in_size), lambda i: (i, 0))]
    in_specs += [_resident(a) for a in args[1:]]
    out_specs = pl.BlockSpec((tile_b, OUT_PAD), lambda i: (i, 0))

    # 3 layer matmuls + 4 LN-statistics matmuls (2 per LayerNorm) on the MXU.
    flops = 2 * b_pad * (in_size * HIDDEN + HIDDEN * HIDDEN + HIDDEN * OUT_PAD
                         + 4 * HIDDEN * HIDDEN)
    bytes_accessed = (x.size * x.dtype.itemsize
                      + b_pad * OUT_PAD * 2                       # bf16 output
                      + sum(a.size * a.dtype.itemsize for a in args[1:]))

    out = pl.pallas_call(
        dqn_kernel,
        out_shape=jax.ShapeDtypeStruct((b_pad, OUT_PAD), jnp.bfloat16),
        grid=grid,
        in_specs=in_specs,
        out_specs=out_specs,
        compiler_params=pltpu.CompilerParams(
            dimension_semantics=("parallel",)),
        cost_estimate=pl.CostEstimate(
            flops=flops,
            transcendentals=2 * b_pad,          # one rsqrt per row per LN
            bytes_accessed=bytes_accessed),
    )(*args)

    return out[:B, :out_size].astype(jnp.float32)


def prepare_params(params):
    """One-time prep: bf16 weight casts, fc3 pad to 128 lanes, resident ones."""
    out_size = params["w3"].shape[1]
    return {
        "w1": params["w1"].astype(jnp.bfloat16),
        "b1": params["b1"],
        "g1": params["g1"],
        "be1": params["be1"],
        "w2": params["w2"].astype(jnp.bfloat16),
        "b2": params["b2"],
        "g2": params["g2"],
        "be2": params["be2"],
        "w3": jnp.pad(params["w3"],
                      ((0, 0), (0, OUT_PAD - out_size))).astype(jnp.bfloat16),
        "b3": jnp.pad(params["b3"], ((0, 0), (0, OUT_PAD - out_size))),
        "ones": jnp.ones((HIDDEN, HIDDEN), jnp.float32),
    }


def _xavier_uniform(key, fan_in, fan_out):
    # torch.nn.init.xavier_uniform_ (gain=1), stored transposed as (in, out).
    bound = math.sqrt(6.0 / (fan_in + fan_out))
    return jax.random.uniform(key, (fan_in, fan_out), jnp.float32, -bound, bound)


def _linear_bias(key, fan_in, fan_out):
    # torch.nn.Linear default bias init: U(-1/sqrt(fan_in), 1/sqrt(fan_in)).
    bound = 1.0 / math.sqrt(fan_in)
    return jax.random.uniform(key, (1, fan_out), jnp.float32, -bound, bound)


def init_params(key, input_size, output_size):
    k1, k2, k3, k4, k5, k6 = jax.random.split(key, 6)
    return {
        "w1": _xavier_uniform(k1, input_size, HIDDEN),
        "b1": _linear_bias(k2, input_size, HIDDEN),
        "g1": jnp.ones((1, HIDDEN), jnp.float32),
        "be1": jnp.zeros((1, HIDDEN), jnp.float32),
        "w2": _xavier_uniform(k3, HIDDEN, HIDDEN),
        "b2": _linear_bias(k4, HIDDEN, HIDDEN),
        "g2": jnp.ones((1, HIDDEN), jnp.float32),
        "be2": jnp.zeros((1, HIDDEN), jnp.float32),
        "w3": _xavier_uniform(k5, HIDDEN, output_size),
        "b3": _linear_bias(k6, HIDDEN, output_size),
    }


def dqn_reference(x, p):
    """Pure-f32 reference matching the PyTorch module."""
    def ln(h):
        mu = jnp.mean(h, axis=-1, keepdims=True)
        var = jnp.mean((h - mu) ** 2, axis=-1, keepdims=True)
        return (h - mu) * jax.lax.rsqrt(var + LN_EPS)

    h = jnp.maximum(ln(x @ p["w1"] + p["b1"]) * p["g1"] + p["be1"], 0.0)
    h = jnp.maximum(ln(h @ p["w2"] + p["b2"]) * p["g2"] + p["be2"], 0.0)
    return h @ p["w3"] + p["b3"]


if __name__ == "__main__":
    key = jax.random.PRNGKey(0)
    k_params, k_x1, k_x2 = jax.random.split(key, 3)

    input_size = 16    # borrower state features
    output_size = 4    # discrete actions
    params = init_params(k_params, input_size, output_size)
    prepared = prepare_params(params)   # one-time: bf16 casts, fc3 pad, ones

    # small demo batch (single grid step)
    x1 = jax.random.normal(k_x1, (8, input_size), jnp.float32)
    out1 = jax.block_until_ready(dqn_forward(x1, prepared, out_size=output_size))
    ref1 = dqn_reference(x1, params)
    assert out1.shape == (8, output_size)
    # bf16 MXU operands + bf16 output -> loosened tolerance vs. pure-f32 ref
    assert jnp.allclose(out1, ref1, atol=5e-2, rtol=5e-2)

    # non-multiple-of-tile batch: exercises padding + multi-step parallel grid
    x2 = jax.random.normal(k_x2, (20, input_size), jnp.float32)
    out2 = jax.block_until_ready(dqn_forward(x2, prepared, out_size=output_size))
    ref2 = dqn_reference(x2, params)
    assert out2.shape == (20, output_size)
    assert jnp.allclose(out2, ref2, atol=5e-2, rtol=5e-2)

    print("KERNEL_OK")
</pallas_src>

<mosaic_0001>
module attributes {stable_mosaic.version = 11 : i64} {
  func.func @dqn_kernel(%arg0: i32, %arg1: memref<8x16xf32, #tpu.memory_space<vmem>>, %arg2: memref<16x128xbf16, #tpu.memory_space<vmem>>, %arg3: memref<1x128xf32, #tpu.memory_space<vmem>>, %arg4: memref<1x128xf32, #tpu.memory_space<vmem>>, %arg5: memref<1x128xf32, #tpu.memory_space<vmem>>, %arg6: memref<128x128xbf16, #tpu.memory_space<vmem>>, %arg7: memref<1x128xf32, #tpu.memory_space<vmem>>, %arg8: memref<1x128xf32, #tpu.memory_space<vmem>>, %arg9: memref<1x128xf32, #tpu.memory_space<vmem>>, %arg10: memref<128x128xbf16, #tpu.memory_space<vmem>>, %arg11: memref<1x128xf32, #tpu.memory_space<vmem>>, %arg12: memref<128x128xf32, #tpu.memory_space<vmem>>, %arg13: memref<8x128xbf16, #tpu.memory_space<vmem>>) attributes {dimension_semantics = [#tpu.dimension_semantics<parallel>], iteration_bounds = array<i64: 1>, scalar_prefetch = 0 : i64, scratch_operands = 0 : i64, tpu.core_type = #tpu.core_type<tc>, window_params = [{transform_indices = @transform_0, window_bounds = array<i64: 8, 16>}, {pipeline_mode = #tpu.pipeline_mode<synchronous>, transform_indices = @transform_1, window_bounds = array<i64: 16, 128>}, {pipeline_mode = #tpu.pipeline_mode<synchronous>, transform_indices = @transform_2, window_bounds = array<i64: 1, 128>}, {pipeline_mode = #tpu.pipeline_mode<synchronous>, transform_indices = @transform_3, window_bounds = array<i64: 1, 128>}, {pipeline_mode = #tpu.pipeline_mode<synchronous>, transform_indices = @transform_4, window_bounds = array<i64: 1, 128>}, {pipeline_mode = #tpu.pipeline_mode<synchronous>, transform_indices = @transform_5, window_bounds = array<i64: 128, 128>}, {pipeline_mode = #tpu.pipeline_mode<synchronous>, transform_indices = @transform_6, window_bounds = array<i64: 1, 128>}, {pipeline_mode = #tpu.pipeline_mode<synchronous>, transform_indices = @transform_7, window_bounds = array<i64: 1, 128>}, {pipeline_mode = #tpu.pipeline_mode<synchronous>, transform_indices = @transform_8, window_bounds = array<i64: 1, 128>}, {pipeline_mode = #tpu.pipeline_mode<synchronous>, transform_indices = @transform_9, window_bounds = array<i64: 128, 128>}, {pipeline_mode = #tpu.pipeline_mode<synchronous>, transform_indices = @transform_10, window_bounds = array<i64: 1, 128>}, {pipeline_mode = #tpu.pipeline_mode<synchronous>, transform_indices = @transform_11, window_bounds = array<i64: 128, 128>}, {transform_indices = @transform_12, window_bounds = array<i64: 8, 128>}]} {
    %c0 = arith.constant 0 : index
    %c0_0 = arith.constant 0 : index
    %0 = vector.load %arg1[%c0, %c0_0] : memref<8x16xf32, #tpu.memory_space<vmem>>, vector<8x16xf32>
    %1 = arith.truncf %0 : vector<8x16xf32> to vector<8x16xbf16>
    %c0_1 = arith.constant 0 : index
    %c0_2 = arith.constant 0 : index
    %2 = vector.load %arg12[%c0_1, %c0_2] : memref<128x128xf32, #tpu.memory_space<vmem>>, vector<128x128xf32>
    %c0_3 = arith.constant 0 : index
    %c0_4 = arith.constant 0 : index
    %3 = vector.load %arg2[%c0_3, %c0_4] : memref<16x128xbf16, #tpu.memory_space<vmem>>, vector<16x128xbf16>
    %cst = arith.constant dense<0.000000e+00> : vector<8x128xf32>
    %4 = tpu.matmul %1, %3, %cst {dimension_numbers = #tpu.dot_dimension_numbers<[1], [0], [0], [1], [0, 0, 1, 1], [], []>} : vector<8x16xbf16>, vector<16x128xbf16>, vector<8x128xf32> -> vector<8x128xf32>
    %c0_5 = arith.constant 0 : index
    %c0_6 = arith.constant 0 : index
    %5 = vector.load %arg3[%c0_5, %c0_6] : memref<1x128xf32, #tpu.memory_space<vmem>>, vector<1x128xf32>
    %6 = vector.broadcast %5 : vector<1x128xf32> to vector<8x128xf32>
    %7 = arith.addf %4, %6 : vector<8x128xf32>
    %c0_7 = arith.constant 0 : index
    %c0_8 = arith.constant 0 : index
    %8 = vector.load %arg4[%c0_7, %c0_8] : memref<1x128xf32, #tpu.memory_space<vmem>>, vector<1x128xf32>
    %c0_9 = arith.constant 0 : index
    %c0_10 = arith.constant 0 : index
    %9 = vector.load %arg5[%c0_9, %c0_10] : memref<1x128xf32, #tpu.memory_space<vmem>>, vector<1x128xf32>
    %cst_11 = arith.constant dense<0.000000e+00> : vector<8x128xf32>
    %10 = tpu.matmul %7, %2, %cst_11 {dimension_numbers = #tpu.dot_dimension_numbers<[1], [0], [0], [1], [0, 0, 1, 1], [], []>} : vector<8x128xf32>, vector<128x128xf32>, vector<8x128xf32> -> vector<8x128xf32>
    %11 = arith.mulf %7, %7 : vector<8x128xf32>
    %cst_12 = arith.constant dense<0.000000e+00> : vector<8x128xf32>
    %12 = tpu.matmul %11, %2, %cst_12 {dimension_numbers = #tpu.dot_dimension_numbers<[1], [0], [0], [1], [0, 0, 1, 1], [], []>} : vector<8x128xf32>, vector<128x128xf32>, vector<8x128xf32> -> vector<8x128xf32>
    %cst_13 = arith.constant 7.812500e-03 : f32
    %13 = vector.broadcast %cst_13 : f32 to vector<8x128xf32>
    %14 = arith.mulf %10, %13 : vector<8x128xf32>
    %cst_14 = arith.constant 7.812500e-03 : f32
    %15 = vector.broadcast %cst_14 : f32 to vector<8x128xf32>
    %16 = arith.mulf %12, %15 : vector<8x128xf32>
    %17 = arith.mulf %14, %14 : vector<8x128xf32>
    %18 = arith.subf %16, %17 : vector<8x128xf32>
    %cst_15 = arith.constant 0.000000e+00 : f32
    %19 = vector.broadcast %cst_15 : f32 to vector<8x128xf32>
    %20 = arith.maximumf %18, %19 : vector<8x128xf32>
    %21 = arith.subf %7, %14 : vector<8x128xf32>
    %cst_16 = arith.constant 9.99999974E-6 : f32
    %22 = vector.broadcast %cst_16 : f32 to vector<8x128xf32>
    %23 = arith.addf %20, %22 : vector<8x128xf32>
    %24 = math.rsqrt %23 : vector<8x128xf32>
    %25 = arith.mulf %21, %24 : vector<8x128xf32>
    %26 = vector.broadcast %8 : vector<1x128xf32> to vector<8x128xf32>
    %27 = arith.mulf %25, %26 : vector<8x128xf32>
    %28 = vector.broadcast %9 : vector<1x128xf32> to vector<8x128xf32>
    %29 = arith.addf %27, %28 : vector<8x128xf32>
    %cst_17 = arith.constant 0.000000e+00 : f32
    %30 = vector.broadcast %cst_17 : f32 to vector<8x128xf32>
    %31 = arith.maximumf %29, %30 : vector<8x128xf32>
    %32 = arith.truncf %31 : vector<8x128xf32> to vector<8x128xbf16>
    %c0_18 = arith.constant 0 : index
    %c0_19 = arith.constant 0 : index
    %33 = vector.load %arg6[%c0_18, %c0_19] : memref<128x128xbf16, #tpu.memory_space<vmem>>, vector<128x128xbf16>
    %cst_20 = arith.constant dense<0.000000e+00> : vector<8x128xf32>
    %34 = tpu.matmul %32, %33, %cst_20 {dimension_numbers = #tpu.dot_dimension_numbers<[1], [0], [0], [1], [0, 0, 1, 1], [], []>} : vector<8x128xbf16>, vector<128x128xbf16>, vector<8x128xf32> -> vector<8x128xf32>
    %c0_21 = arith.constant 0 : index
    %c0_22 = arith.constant 0 : index
    %35 = vector.load %arg7[%c0_21, %c0_22] : memref<1x128xf32, #tpu.memory_space<vmem>>, vector<1x128xf32>
    %36 = vector.broadcast %35 : vector<1x128xf32> to vector<8x128xf32>
    %37 = arith.addf %34, %36 : vector<8x128xf32>
    %c0_23 = arith.constant 0 : index
    %c0_24 = arith.constant 0 : index
    %38 = vector.load %arg8[%c0_23, %c0_24] : memref<1x128xf32, #tpu.memory_space<vmem>>, vector<1x128xf32>
    %c0_25 = arith.constant 0 : index
    %c0_26 = arith.constant 0 : index
    %39 = vector.load %arg9[%c0_25, %c0_26] : memref<1x128xf32, #tpu.memory_space<vmem>>, vector<1x128xf32>
    %cst_27 = arith.constant dense<0.000000e+00> : vector<8x128xf32>
    %40 = tpu.matmul %37, %2, %cst_27 {dimension_numbers = #tpu.dot_dimension_numbers<[1], [0], [0], [1], [0, 0, 1, 1], [], []>} : vector<8x128xf32>, vector<128x128xf32>, vector<8x128xf32> -> vector<8x128xf32>
    %41 = arith.mulf %37, %37 : vector<8x128xf32>
    %cst_28 = arith.constant dense<0.000000e+00> : vector<8x128xf32>
    %42 = tpu.matmul %41, %2, %cst_28 {dimension_numbers = #tpu.dot_dimension_numbers<[1], [0], [0], [1], [0, 0, 1, 1], [], []>} : vector<8x128xf32>, vector<128x128xf32>, vector<8x128xf32> -> vector<8x128xf32>
    %cst_29 = arith.constant 7.812500e-03 : f32
    %43 = vector.broadcast %cst_29 : f32 to vector<8x128xf32>
    %44 = arith.mulf %40, %43 : vector<8x128xf32>
    %cst_30 = arith.constant 7.812500e-03 : f32
    %45 = vector.broadcast %cst_30 : f32 to vector<8x128xf32>
    %46 = arith.mulf %42, %45 : vector<8x128xf32>
    %47 = arith.mulf %44, %44 : vector<8x128xf32>
    %48 = arith.subf %46, %47 : vector<8x128xf32>
    %cst_31 = arith.constant 0.000000e+00 : f32
    %49 = vector.broadcast %cst_31 : f32 to vector<8x128xf32>
    %50 = arith.maximumf %48, %49 : vector<8x128xf32>
    %51 = arith.subf %37, %44 : vector<8x128xf32>
    %cst_32 = arith.constant 9.99999974E-6 : f32
    %52 = vector.broadcast %cst_32 : f32 to vector<8x128xf32>
    %53 = arith.addf %50, %52 : vector<8x128xf32>
    %54 = math.rsqrt %53 : vector<8x128xf32>
    %55 = arith.mulf %51, %54 : vector<8x128xf32>
    %56 = vector.broadcast %38 : vector<1x128xf32> to vector<8x128xf32>
    %57 = arith.mulf %55, %56 : vector<8x128xf32>
    %58 = vector.broadcast %39 : vector<1x128xf32> to vector<8x128xf32>
    %59 = arith.addf %57, %58 : vector<8x128xf32>
    %cst_33 = arith.constant 0.000000e+00 : f32
    %60 = vector.broadcast %cst_33 : f32 to vector<8x128xf32>
    %61 = arith.maximumf %59, %60 : vector<8x128xf32>
    %62 = arith.truncf %61 : vector<8x128xf32> to vector<8x128xbf16>
    %c0_34 = arith.constant 0 : index
    %c0_35 = arith.constant 0 : index
    %63 = vector.load %arg10[%c0_34, %c0_35] : memref<128x128xbf16, #tpu.memory_space<vmem>>, vector<128x128xbf16>
    %cst_36 = arith.constant dense<0.000000e+00> : vector<8x128xf32>
    %64 = tpu.matmul %62, %63, %cst_36 {dimension_numbers = #tpu.dot_dimension_numbers<[1], [0], [0], [1], [0, 0, 1, 1], [], []>} : vector<8x128xbf16>, vector<128x128xbf16>, vector<8x128xf32> -> vector<8x128xf32>
    %c0_37 = arith.constant 0 : index
    %c0_38 = arith.constant 0 : index
    %65 = vector.load %arg11[%c0_37, %c0_38] : memref<1x128xf32, #tpu.memory_space<vmem>>, vector<1x128xf32>
    %66 = vector.broadcast %65 : vector<1x128xf32> to vector<8x128xf32>
    %67 = arith.addf %64, %66 : vector<8x128xf32>
    %68 = arith.truncf %67 : vector<8x128xf32> to vector<8x128xbf16>
    %c0_39 = arith.constant 0 : index
    %c0_40 = arith.constant 0 : index
    %69 = vector.load %arg13[%c0_39, %c0_40] : memref<8x128xbf16, #tpu.memory_space<vmem>>, vector<8x128xbf16>
    tpu.vector_store %arg13[%c0_39, %c0_40], %68 {strides = array<i32>} : memref<8x128xbf16, #tpu.memory_space<vmem>>, vector<8x128xbf16>,
    return
  }
  func.func @transform_0(%arg0: i32) -> (i32, i32) {
    %c0_i32 = arith.constant 0 : i32
    %c0_i32_0 = arith.constant 0 : i32
    return %arg0, %c0_i32 : i32, i32
  }
  func.func @transform_1(%arg0: i32) -> (i32, i32) {
    %c0_i32 = arith.constant 0 : i32
    %c0_i32_0 = arith.constant 0 : i32
    %c0_i32_1 = arith.constant 0 : i32
    return %c0_i32, %c0_i32_0 : i32, i32
  }
  func.func @transform_2(%arg0: i32) -> (i32, i32) {
    %c0_i32 = arith.constant 0 : i32
    %c0_i32_0 = arith.constant 0 : i32
    %c0_i32_1 = arith.constant 0 : i32
    return %c0_i32, %c0_i32_0 : i32, i32
  }
  func.func @transform_3(%arg0: i32) -> (i32, i32) {
    %c0_i32 = arith.constant 0 : i32
    %c0_i32_0 = arith.constant 0 : i32
    %c0_i32_1 = arith.constant 0 : i32
    return %c0_i32, %c0_i32_0 : i32, i32
  }
  func.func @transform_4(%arg0: i32) -> (i32, i32) {
    %c0_i32 = arith.constant 0 : i32
    %c0_i32_0 = arith.constant 0 : i32
    %c0_i32_1 = arith.constant 0 : i32
    return %c0_i32, %c0_i32_0 : i32, i32
  }
  func.func @transform_5(%arg0: i32) -> (i32, i32) {
    %c0_i32 = arith.constant 0 : i32
    %c0_i32_0 = arith.constant 0 : i32
    %c0_i32_1 = arith.constant 0 : i32
    return %c0_i32, %c0_i32_0 : i32, i32
  }
  func.func @transform_6(%arg0: i32) -> (i32, i32) {
    %c0_i32 = arith.constant 0 : i32
    %c0_i32_0 = arith.constant 0 : i32
    %c0_i32_1 = arith.constant 0 : i32
    return %c0_i32, %c0_i32_0 : i32, i32
  }
  func.func @transform_7(%arg0: i32) -> (i32, i32) {
    %c0_i32 = arith.constant 0 : i32
    %c0_i32_0 = arith.constant 0 : i32
    %c0_i32_1 = arith.constant 0 : i32
    return %c0_i32, %c0_i32_0 : i32, i32
  }
  func.func @transform_8(%arg0: i32) -> (i32, i32) {
    %c0_i32 = arith.constant 0 : i32
    %c0_i32_0 = arith.constant 0 : i32
    %c0_i32_1 = arith.constant 0 : i32
    return %c0_i32, %c0_i32_0 : i32, i32
  }
  func.func @transform_9(%arg0: i32) -> (i32, i32) {
    %c0_i32 = arith.constant 0 : i32
    %c0_i32_0 = arith.constant 0 : i32
    %c0_i32_1 = arith.constant 0 : i32
    return %c0_i32, %c0_i32_0 : i32, i32
  }
  func.func @transform_10(%arg0: i32) -> (i32, i32) {
    %c0_i32 = arith.constant 0 : i32
    %c0_i32_0 = arith.constant 0 : i32
    %c0_i32_1 = arith.constant 0 : i32
    return %c0_i32, %c0_i32_0 : i32, i32
  }
  func.func @transform_11(%arg0: i32) -> (i32, i32) {
    %c0_i32 = arith.constant 0 : i32
    %c0_i32_0 = arith.constant 0 : i32
    %c0_i32_1 = arith.constant 0 : i32
    return %c0_i32, %c0_i32_0 : i32, i32
  }
  func.func @transform_12(%arg0: i32) -> (i32, i32) {
    %c0_i32 = arith.constant 0 : i32
    %c0_i32_0 = arith.constant 0 : i32
    return %arg0, %c0_i32 : i32, i32
  }
}

</mosaic_0001>

<llo_original>
// kernel: dqn_forward.1
$region0: #{dqn_forward.1}
  #allocation0 [shape = 'u32[]', space=smem, size = 0x4, offset = 0x4, fixed_abs, tag = 'smem constant byte address 0x4 - core index']
  #allocation1 [shape = 'u32[144,128]{1,0:T(1,128)}', space=vmem, size = 0x12000, scoped, tag = 'internal scratch']
  %s0 = inlined_call_operand.hbm [shape: f32[8,16], index: 0, kind: input, shape index: {}]
  %s1 = inlined_call_operand.vmem [shape: bf16[16,128], index: 1, kind: input, shape index: {}]
  %s2 = inlined_call_operand.vmem [shape: f32[1,128], index: 2, kind: input, shape index: {}]
  %s3 = inlined_call_operand.vmem [shape: f32[1,128], index: 3, kind: input, shape index: {}]
  %s4 = inlined_call_operand.vmem [shape: f32[1,128], index: 4, kind: input, shape index: {}]
  %s5 = inlined_call_operand.hbm [shape: bf16[128,128], index: 5, kind: input, shape index: {}]
  %s6 = inlined_call_operand.vmem [shape: f32[1,128], index: 6, kind: input, shape index: {}]
  %s7 = inlined_call_operand.vmem [shape: f32[1,128], index: 7, kind: input, shape index: {}]
  %s8 = inlined_call_operand.vmem [shape: f32[1,128], index: 8, kind: input, shape index: {}]
  %s9 = inlined_call_operand.hbm [shape: bf16[128,128], index: 9, kind: input, shape index: {}]
  %s10 = inlined_call_operand.vmem [shape: f32[1,128], index: 10, kind: input, shape index: {}]
  %s11 = inlined_call_operand.hbm [shape: f32[128,128], index: 11, kind: input, shape index: {}]
  %s12 = inlined_call_operand.vmem [shape: bf16[8,128], index: 12, kind: output, shape index: {}]
  %s13 = sld [smem:[#allocation0]]
  $region74: #{dqn_forward.1} parent=0
    _
  %s15 = ssub.s32 1, %s13
  %s16 = scalar_select 0, %s15, %s13
  $region1: #{dqn_forward.1} parent=0
    #allocation2 [shape = 'u8[4096]{0}', space=vmem, size = 0x1000, scoped, tag = 'input window, operand 0, single buffered']
    #allocation3 [shape = 's32[1]{0}', space=sflag, size = 0x4, scoped, tag = 'scoped memory for dqn_forward.1']
    #allocation4 [shape = 'u8[32768]{0}', space=vmem, size = 0x8000, scoped, tag = 'input window, operand 5, single buffered']
    #allocation5 [shape = 's32[1]{0}', space=sflag, size = 0x4, scoped, tag = 'scoped memory for dqn_forward.1']
    #allocation6 [shape = 'u8[32768]{0}', space=vmem, size = 0x8000, scoped, tag = 'input window, operand 9, single buffered']
    #allocation7 [shape = 'u8[65536]{0}', space=vmem, size = 0x10000, scoped, tag = 'input window, operand 11, single buffered']
    #allocation8 [shape = 's32[1]{0}', space=sflag, size = 0x4, scoped, tag = 'scoped memory for dqn_forward.1']
    %17 = vsyncpa [#allocation3], 0
    %18 = vsyncpa [#allocation5], 0
    %19 = vsyncpa [#allocation8], 0
    // Predicated region
    $region2: #{dqn_forward.1} parent=1 // pred_check
      _
    $region3: #{dqn_forward.1} parent=1 // pred_check_branch
      %21 = sbr.rel (0) target = $region5
    $region4: #{dqn_forward.1} parent=1 // pred_region
      %s23 = ssub.s32 128, 128
      %24 = vsyncadd [#allocation3], %s23
      %s26 = sshll.u32 [#allocation2], 4
      %s27 = int_to_ptr.vmem [resolvable:$true] %s26
      %29 = dma.hbm_to_vmem [thread:$0]  %s0, 128, %s27, [#allocation3]
    $region5: #{dqn_forward.1} parent=1 // pred_fallthru
      _
    // Predicated region
    $region6: #{dqn_forward.1} parent=1 // pred_check
      _
    $region7: #{dqn_forward.1} parent=1 // pred_check_branch
      %31 = sbr.rel (0) target = $region9
    $region8: #{dqn_forward.1} parent=1 // pred_region
      _
    $region9: #{dqn_forward.1} parent=1 // pred_fallthru
      _
    // Predicated region
    $region10: #{dqn_forward.1} parent=1 // pred_check
      _
    $region11: #{dqn_forward.1} parent=1 // pred_check_branch
      %33 = sbr.rel (0) target = $region13
    $region12: #{dqn_forward.1} parent=1 // pred_region
      _
    $region13: #{dqn_forward.1} parent=1 // pred_fallthru
      _
    // Predicated region
    $region14: #{dqn_forward.1} parent=1 // pred_check
      _
    $region15: #{dqn_forward.1} parent=1 // pred_check_branch
      %35 = sbr.rel (0) target = $region17
    $region16: #{dqn_forward.1} parent=1 // pred_region
      _
    $region17: #{dqn_forward.1} parent=1 // pred_fallthru
      _
    // Predicated region
    $region18: #{dqn_forward.1} parent=1 // pred_check
      _
    $region19: #{dqn_forward.1} parent=1 // pred_check_branch
      %37 = sbr.rel (0) target = $region21
    $region20: #{dqn_forward.1} parent=1 // pred_region
      _
    $region21: #{dqn_forward.1} parent=1 // pred_fallthru
      _
    // Predicated region
    $region22: #{dqn_forward.1} parent=1 // pred_check
      _
    $region23: #{dqn_forward.1} parent=1 // pred_check_branch
      %39 = sbr.rel (0) target = $region25
    $region24: #{dqn_forward.1} parent=1 // pred_region
      %s41 = ssub.s32 1024, 1024
      %42 = vsyncadd [#allocation5], %s41
      %s43 = sshll.u32 [#allocation4], 4
      %s44 = int_to_ptr.vmem [resolvable:$true] %s43
      %49 = dma.hbm_to_vmem [thread:$0]  %s5, 1024, %s44, [#allocation5], 64, 64, 4
    $region25: #{dqn_forward.1} parent=1 // pred_fallthru
      _
    // Predicated region
    $region26: #{dqn_forward.1} parent=1 // pred_check
      _
    $region27: #{dqn_forward.1} parent=1 // pred_check_branch
      %51 = sbr.rel (0) target = $region29
    $region28: #{dqn_forward.1} parent=1 // pred_region
      _
    $region29: #{dqn_forward.1} parent=1 // pred_fallthru
      _
    // Predicated region
    $region30: #{dqn_forward.1} parent=1 // pred_check
      _
    $region31: #{dqn_forward.1} parent=1 // pred_check_branch
      %53 = sbr.rel (0) target = $region33
    $region32: #{dqn_forward.1} parent=1 // pred_region
      _
    $region33: #{dqn_forward.1} parent=1 // pred_fallthru
      _
    // Predicated region
    $region34: #{dqn_forward.1} parent=1 // pred_check
      _
    $region35: #{dqn_forward.1} parent=1 // pred_check_branch
      %55 = sbr.rel (0) target = $region37
    $region36: #{dqn_forward.1} parent=1 // pred_region
      _
    $region37: #{dqn_forward.1} parent=1 // pred_fallthru
      _
    // Predicated region
    $region38: #{dqn_forward.1} parent=1 // pred_check
      _
    $region39: #{dqn_forward.1} parent=1 // pred_check_branch
      %57 = sbr.rel (0) target = $region41
    $region40: #{dqn_forward.1} parent=1 // pred_region
      %s59 = ssub.s32 1024, 1024
      %60 = vsyncadd [#allocation5], %s59
      %s61 = sshll.u32 [#allocation6], 4
      %s62 = int_to_ptr.vmem [resolvable:$true] %s61
      %67 = dma.hbm_to_vmem [thread:$0]  %s9, 1024, %s62, [#allocation5], 64, 64, 4
    $region41: #{dqn_forward.1} parent=1 // pred_fallthru
      _
    // Predicated region
    $region42: #{dqn_forward.1} parent=1 // pred_check
      _
    $region43: #{dqn_forward.1} parent=1 // pred_check_branch
      %69 = sbr.rel (0) target = $region45
    $region44: #{dqn_forward.1} parent=1 // pred_region
      _
    $region45: #{dqn_forward.1} parent=1 // pred_fallthru
      _
    // Predicated region
    $region46: #{dqn_forward.1} parent=1 // pred_check
      _
    $region47: #{dqn_forward.1} parent=1 // pred_check_branch
      %71 = sbr.rel (0) target = $region49
    $region48: #{dqn_forward.1} parent=1 // pred_region
      %s73 = ssub.s32 2048, 2048
      %74 = vsyncadd [#allocation8], %s73
      %s75 = sshll.u32 [#allocation7], 4
      %s76 = int_to_ptr.vmem [resolvable:$true] %s75
      %81 = dma.hbm_to_vmem [thread:$0]  %s11, 2048, %s76, [#allocation8], 128, 128, 8
    $region49: #{dqn_forward.1} parent=1 // pred_fallthru
      _
    // Predicated region
    $region50: #{dqn_forward.1} parent=1 // pred_check
      _
    $region51: #{dqn_forward.1} parent=1 // pred_check_branch
      %83 = sbr.rel (0) target = $region53
    $region52: #{dqn_forward.1} parent=1 // pred_region
      %84 = dma.done [#allocation3], 128
    $region53: #{dqn_forward.1} parent=1 // pred_fallthru
      _
    // Predicated region
    $region54: #{dqn_forward.1} parent=1 // pred_check
      _
    $region55: #{dqn_forward.1} parent=1 // pred_check_branch
      %86 = sbr.rel (0) target = $region57
    $region56: #{dqn_forward.1} parent=1 // pred_region
      %87 = dma.done [#allocation5], 1024
    $region57: #{dqn_forward.1} parent=1 // pred_fallthru
      _
    // Predicated region
    $region58: #{dqn_forward.1} parent=1 // pred_check
      _
    $region59: #{dqn_forward.1} parent=1 // pred_check_branch
      %89 = sbr.rel (0) target = $region61
    $region60: #{dqn_forward.1} parent=1 // pred_region
      %90 = dma.done [#allocation5], 1024
    $region61: #{dqn_forward.1} parent=1 // pred_fallthru
      _
    // Predicated region
    $region62: #{dqn_forward.1} parent=1 // pred_check
      _
    $region63: #{dqn_forward.1} parent=1 // pred_check_branch
      %92 = sbr.rel (0) target = $region65
    $region64: #{dqn_forward.1} parent=1 // pred_region
      %93 = dma.done [#allocation8], 2048
    $region65: #{dqn_forward.1} parent=1 // pred_fallthru
      _
    %v95 = vld [vmem:[#allocation2] sm:$0xff]
    %v96 = vpack.c.bf16 %v95, %v95
    %v97 = vld [vmem:[#allocation7] sm:$0xff]
    %v98 = vld [vmem:[#allocation7 + $0x8] sm:$0xff]
    %v99 = vld [vmem:[#allocation7 + $0x10] sm:$0xff]
    %v100 = vld [vmem:[#allocation7 + $0x18] sm:$0xff]
    %v101 = vld [vmem:[#allocation7 + $0x20] sm:$0xff]
    %v102 = vld [vmem:[#allocation7 + $0x28] sm:$0xff]
    %v103 = vld [vmem:[#allocation7 + $0x30] sm:$0xff]
    %v104 = vld [vmem:[#allocation7 + $0x38] sm:$0xff]
    %v105 = vld [vmem:[#allocation7 + $0x40] sm:$0xff]
    %v106 = vld [vmem:[#allocation7 + $0x48] sm:$0xff]
    %v107 = vld [vmem:[#allocation7 + $0x50] sm:$0xff]
    %v108 = vld [vmem:[#allocation7 + $0x58] sm:$0xff]
    %v109 = vld [vmem:[#allocation7 + $0x60] sm:$0xff]
    %v110 = vld [vmem:[#allocation7 + $0x68] sm:$0xff]
    %v111 = vld [vmem:[#allocation7 + $0x70] sm:$0xff]
    %v112 = vld [vmem:[#allocation7 + $0x78] sm:$0xff]
    %v113 = vld [vmem:[%s1] sm:$0xf]
    %v114 = vld [vmem:[%s1 + $0x4] sm:$0xf]
    %v115 = vld [vmem:[%s2] sm:$0x1]
    %v117 = vlaneseq
    %v118 = vshrl.u32 %v117, 7
    %v119 = vsub.s32 0, %v118
    %v120 = vrot.slane %v115, %v119
    %v124 = vunpack.c.l.b16 %v113
    %v125 = vunpack.c.l.b16 %v114
    %v126 = vpack.c.b16 %v125, %v124
    %vm128 = vcmask 130048
    %v130 = vsel %vm128, %v96, 0
    %132 = vmatprep.subr.bf16.mxu0 0
    %133 = vmatpush1.bf16.msra.mxu0 %v126
    %134 = vmatprep.subr.bf16.mxu0 0
    %135 = vmatpush1.bf16.msra.mxu0 0
    %136 = vmatprep.subr.bf16.mxu0 0
    %137 = vmatpush1.bf16.msra.mxu0 0
    %138 = vmatprep.subr.bf16.mxu0 0
    %139 = vmatpush1.bf16.msra.mxu0 0
    %140 = vmatprep.subr.bf16.mxu0 0
    %141 = vmatpush1.bf16.msra.mxu0 0
    %142 = vmatprep.subr.bf16.mxu0 0
    %143 = vmatpush1.bf16.msra.mxu0 0
    %144 = vmatprep.subr.bf16.mxu0 0
    %145 = vmatpush1.bf16.msra.mxu0 0
    %146 = vmatprep.subr.bf16.mxu0 0
    %147 = vmatpush1.bf16.msra.mxu0 0
    %148 = vmatprep.subr.bf16.mxu0 0
    %149 = vmatpush1.bf16.msra.mxu0 0
    %150 = vmatprep.subr.bf16.mxu0 0
    %151 = vmatpush1.bf16.msra.mxu0 0
    %152 = vmatprep.subr.bf16.mxu0 0
    %153 = vmatpush1.bf16.msra.mxu0 0
    %154 = vmatprep.subr.bf16.mxu0 0
    %155 = vmatpush1.bf16.msra.mxu0 0
    %156 = vmatprep.subr.bf16.mxu0 0
    %157 = vmatpush1.bf16.msra.mxu0 0
    %158 = vmatprep.subr.bf16.mxu0 0
    %159 = vmatpush1.bf16.msra.mxu0 0
    %160 = vmatprep.subr.bf16.mxu0 0
    %161 = vmatpush1.bf16.msra.mxu0 0
    %162 = vmatprep.subr.bf16.mxu0 0
    %163 = vmatpush1.bf16.msra.mxu0 0
    %164 = vmatprep.mubr.bf16.mxu0 0
    %165 = vmatmul.mubr.bf16.gmra.mrb[0].mxu0 %v130
    %v166 = vpop.f32.mrb[0].mxu0
    %v167 = vadd.f32 %v120, %v166
    %v168 = vpop.f32.mrb[0].mxu0
    %v169 = vpop.f32.mrb[0].mxu0
    %v170 = vpop.f32.mrb[0].mxu0
    %171 = vdwg.mxu0
    %v172 = vld [vmem:[%s3] sm:$0x1]
    %v173 = vld [vmem:[%s4] sm:$0x1]
    %174 = vmatprep.subr.mxu0 0.0
    %175 = vmatpush1.msra.mxu0 %v97
    %176 = vmatprep.subr.mxu0 0.0
    %177 = vmatpush1.msra.mxu0 %v98
    %178 = vmatprep.subr.mxu0 0.0
    %179 = vmatpush1.msra.mxu0 %v99
    %180 = vmatprep.subr.mxu0 0.0
    %181 = vmatpush1.msra.mxu0 %v100
    %182 = vmatprep.subr.mxu0 0.0
    %183 = vmatpush1.msra.mxu0 %v101
    %184 = vmatprep.subr.mxu0 0.0
    %185 = vmatpush1.msra.mxu0 %v102
    %186 = vmatprep.subr.mxu0 0.0
    %187 = vmatpush1.msra.mxu0 %v103
    %188 = vmatprep.subr.mxu0 0.0
    %189 = vmatpush1.msra.mxu0 %v104
    %190 = vmatprep.subr.mxu0 0.0
    %191 = vmatpush1.msra.mxu0 %v105
    %192 = vmatprep.subr.mxu0 0.0
    %193 = vmatpush1.msra.mxu0 %v106
    %194 = vmatprep.subr.mxu0 0.0
    %195 = vmatpush1.msra.mxu0 %v107
    %196 = vmatprep.subr.mxu0 0.0
    %197 = vmatpush1.msra.mxu0 %v108
    %198 = vmatprep.subr.mxu0 0.0
    %199 = vmatpush1.msra.mxu0 %v109
    %200 = vmatprep.subr.mxu0 0.0
    %201 = vmatpush1.msra.mxu0 %v110
    %202 = vmatprep.subr.mxu0 0.0
    %203 = vmatpush1.msra.mxu0 %v111
    %204 = vmatprep.subr.mxu0 0.0
    %205 = vmatpush1.msra.mxu0 %v112
    %206 = vmatprep.subr.mxu0 0.0
    %207 = vmatpush1.msra.mxu0 0.0
    %208 = vmatprep.subr.mxu0 0.0
    %209 = vmatpush1.msra.mxu0 0.0
    %210 = vmatprep.subr.mxu0 0.0
    %211 = vmatpush1.msra.mxu0 0.0
    %212 = vmatprep.subr.mxu0 0.0
    %213 = vmatpush1.msra.mxu0 0.0
    %214 = vmatprep.subr.mxu0 0.0
    %215 = vmatpush1.msra.mxu0 0.0
    %216 = vmatprep.subr.mxu0 0.0
    %217 = vmatpush1.msra.mxu0 0.0
    %218 = vmatprep.subr.mxu0 0.0
    %219 = vmatpush1.msra.mxu0 0.0
    %220 = vmatprep.subr.mxu0 0.0
    %221 = vmatpush1.msra.mxu0 0.0
    %222 = vmatprep.subr.mxu0 0.0
    %223 = vmatpush1.msra.mxu0 0.0
    %224 = vmatprep.subr.mxu0 0.0
    %225 = vmatpush1.msra.mxu0 0.0
    %226 = vmatprep.subr.mxu0 0.0
    %227 = vmatpush1.msra.mxu0 0.0
    %228 = vmatprep.subr.mxu0 0.0
    %229 = vmatpush1.msra.mxu0 0.0
    %230 = vmatprep.subr.mxu0 0.0
    %231 = vmatpush1.msra.mxu0 0.0
    %232 = vmatprep.subr.mxu0 0.0
    %233 = vmatpush1.msra.mxu0 0.0
    %234 = vmatprep.subr.mxu0 0.0
    %235 = vmatpush1.msra.mxu0 0.0
    %236 = vmatprep.subr.mxu0 0.0
    %237 = vmatpush1.msra.mxu0 0.0
    %238 = vmatprep.mubr.f32.mxu0 0.0
    %239 = vmatmul.mubr.f32.gmra.mrb[0].mxu0 %v167
    %v240 = vpop.f32.mrb[0].mxu0
    %v241 = vadd.f32 0.0, %v240
    %v242 = vpop.f32.mrb[0].mxu0
    %243 = vdwg.mxu0
    %v244 = vmul.f32 %v167, %v167
    %245 = vmatprep.subr.mxu0 0.0
    %246 = vmatpush1.msra.mxu0 %v97
    %247 = vmatprep.subr.mxu0 0.0
    %248 = vmatpush1.msra.mxu0 %v98
    %249 = vmatprep.subr.mxu0 0.0
    %250 = vmatpush1.msra.mxu0 %v99
    %251 = vmatprep.subr.mxu0 0.0
    %252 = vmatpush1.msra.mxu0 %v100
    %253 = vmatprep.subr.mxu0 0.0
    %254 = vmatpush1.msra.mxu0 %v101
    %255 = vmatprep.subr.mxu0 0.0
    %256 = vmatpush1.msra.mxu0 %v102
    %257 = vmatprep.subr.mxu0 0.0
    %258 = vmatpush1.msra.mxu0 %v103
    %259 = vmatprep.subr.mxu0 0.0
    %260 = vmatpush1.msra.mxu0 %v104
    %261 = vmatprep.subr.mxu0 0.0
    %262 = vmatpush1.msra.mxu0 %v105
    %263 = vmatprep.subr.mxu0 0.0
    %264 = vmatpush1.msra.mxu0 %v106
    %265 = vmatprep.subr.mxu0 0.0
    %266 = vmatpush1.msra.mxu0 %v107
    %267 = vmatprep.subr.mxu0 0.0
    %268 = vmatpush1.msra.mxu0 %v108
    %269 = vmatprep.subr.mxu0 0.0
    %270 = vmatpush1.msra.mxu0 %v109
    %271 = vmatprep.subr.mxu0 0.0
    %272 = vmatpush1.msra.mxu0 %v110
    %273 = vmatprep.subr.mxu0 0.0
    %274 = vmatpush1.msra.mxu0 %v111
    %275 = vmatprep.subr.mxu0 0.0
    %276 = vmatpush1.msra.mxu0 %v112
    %277 = vmatprep.subr.mxu0 0.0
    %278 = vmatpush1.msra.mxu0 0.0
    %279 = vmatprep.subr.mxu0 0.0
    %280 = vmatpush1.msra.mxu0 0.0
    %281 = vmatprep.subr.mxu0 0.0
    %282 = vmatpush1.msra.mxu0 0.0
    %283 = vmatprep.subr.mxu0 0.0
    %284 = vmatpush1.msra.mxu0 0.0
    %285 = vmatprep.subr.mxu0 0.0
    %286 = vmatpush1.msra.mxu0 0.0
    %287 = vmatprep.subr.mxu0 0.0
    %288 = vmatpush1.msra.mxu0 0.0
    %289 = vmatprep.subr.mxu0 0.0
    %290 = vmatpush1.msra.mxu0 0.0
    %291 = vmatprep.subr.mxu0 0.0
    %292 = vmatpush1.msra.mxu0 0.0
    %293 = vmatprep.subr.mxu0 0.0
    %294 = vmatpush1.msra.mxu0 0.0
    %295 = vmatprep.subr.mxu0 0.0
    %296 = vmatpush1.msra.mxu0 0.0
    %297 = vmatprep.subr.mxu0 0.0
    %298 = vmatpush1.msra.mxu0 0.0
    %299 = vmatprep.subr.mxu0 0.0
    %300 = vmatpush1.msra.mxu0 0.0
    %301 = vmatprep.subr.mxu0 0.0
    %302 = vmatpush1.msra.mxu0 0.0
    %303 = vmatprep.subr.mxu0 0.0
    %304 = vmatpush1.msra.mxu0 0.0
    %305 = vmatprep.subr.mxu0 0.0
    %306 = vmatpush1.msra.mxu0 0.0
    %307 = vmatprep.subr.mxu0 0.0
    %308 = vmatpush1.msra.mxu0 0.0
    %309 = vmatprep.mubr.f32.mxu0 0.0
    %310 = vmatmul.mubr.f32.gmra.mrb[0].mxu0 %v244
    %v311 = vpop.f32.mrb[0].mxu0
    %v312 = vadd.f32 0.0, %v311
    %v313 = vpop.f32.mrb[0].mxu0
    %314 = vdwg.mxu0
    %v315 = vmul.f32 %v241, 0.0078125
    %v316 = vmul.f32 %v312, 0.0078125
    %v317 = vmul.f32 %v315, %v315
    %v318 = vsub.f32 %v316, %v317
    %v319 = vmax.f32 %v318, 0.0
    %v320 = vsub.f32 %v167, %v315
    %v321 = vadd.f32 %v319, 1e-05
    %v322 = vrsqrt.pop %v321
    %v323 = vmul.f32 %v320, %v322
    %v325 = vlaneseq
    %v326 = vshrl.u32 %v325, 7
    %v327 = vsub.s32 0, %v326
    %v328 = vrot.slane %v172, %v327
    %v330 = vmul.f32 %v323, %v328
    %v332 = vlaneseq
    %v333 = vshrl.u32 %v332, 7
    %v334 = vsub.s32 0, %v333
    %v335 = vrot.slane %v173, %v334
    %v337 = vadd.f32 %v330, %v335
    %v338 = vmax.f32 %v337, 0.0
    %v339 = vpack.c.bf16 %v338, %v338
    %v340 = vld [vmem:[#allocation4] sm:$0xf]
    %v341 = vld [vmem:[#allocation4 + $0x4] sm:$0xf]
    %v342 = vld [vmem:[#allocation4 + $0x8] sm:$0xf]
    %v343 = vld [vmem:[#allocation4 + $0xc] sm:$0xf]
    %v344 = vld [vmem:[#allocation4 + $0x10] sm:$0xf]
    %v345 = vld [vmem:[#allocation4 + $0x14] sm:$0xf]
    %v346 = vld [vmem:[#allocation4 + $0x18] sm:$0xf]
    %v347 = vld [vmem:[#allocation4 + $0x1c] sm:$0xf]
    %v348 = vld [vmem:[#allocation4 + $0x20] sm:$0xf]
    %v349 = vld [vmem:[#allocation4 + $0x24] sm:$0xf]
    %v350 = vld [vmem:[#allocation4 + $0x28] sm:$0xf]
    %v351 = vld [vmem:[#allocation4 + $0x2c] sm:$0xf]
    %v352 = vld [vmem:[#allocation4 + $0x30] sm:$0xf]
    %v353 = vld [vmem:[#allocation4 + $0x34] sm:$0xf]
    %v354 = vld [vmem:[#allocation4 + $0x38] sm:$0xf]
    %v355 = vld [vmem:[#allocation4 + $0x3c] sm:$0xf]
    %v356 = vld [vmem:[%s6] sm:$0x1]
    %v358 = vlaneseq
    %v359 = vshrl.u32 %v358, 7
    %v360 = vsub.s32 0, %v359
    %v361 = vrot.slane %v356, %v360
    %v379 = vunpack.c.l.b16 %v340
    %v380 = vunpack.c.l.b16 %v341
    %v381 = vunpack.c.l.b16 %v342
    %v382 = vunpack.c.l.b16 %v343
    %v383 = vunpack.c.l.b16 %v344
    %v384 = vunpack.c.l.b16 %v345
    %v385 = vunpack.c.l.b16 %v346
    %v386 = vunpack.c.l.b16 %v347
    %v387 = vunpack.c.l.b16 %v348
    %v388 = vunpack.c.l.b16 %v349
    %v389 = vunpack.c.l.b16 %v350
    %v390 = vunpack.c.l.b16 %v351
    %v391 = vunpack.c.l.b16 %v352
    %v392 = vunpack.c.l.b16 %v353
    %v393 = vunpack.c.l.b16 %v354
    %v394 = vunpack.c.l.b16 %v355
    %v395 = vpack.c.b16 %v380, %v379
    %v396 = vpack.c.b16 %v382, %v381
    %v397 = vpack.c.b16 %v384, %v383
    %v398 = vpack.c.b16 %v386, %v385
    %v399 = vpack.c.b16 %v388, %v387
    %v400 = vpack.c.b16 %v390, %v389
    %v401 = vpack.c.b16 %v392, %v391
    %v402 = vpack.c.b16 %v394, %v393
    %411 = vmatprep.subr.bf16.mxu0 0
    %412 = vmatpush1.bf16.msra.mxu0 %v395
    %413 = vmatprep.subr.bf16.mxu0 0
    %414 = vmatpush1.bf16.msra.mxu0 %v396
    %415 = vmatprep.subr.bf16.mxu0 0
    %416 = vmatpush1.bf16.msra.mxu0 %v397
    %417 = vmatprep.subr.bf16.mxu0 0
    %418 = vmatpush1.bf16.msra.mxu0 %v398
    %419 = vmatprep.subr.bf16.mxu0 0
    %420 = vmatpush1.bf16.msra.mxu0 %v399
    %421 = vmatprep.subr.bf16.mxu0 0
    %422 = vmatpush1.bf16.msra.mxu0 %v400
    %423 = vmatprep.subr.bf16.mxu0 0
    %424 = vmatpush1.bf16.msra.mxu0 %v401
    %425 = vmatprep.subr.bf16.mxu0 0
    %426 = vmatpush1.bf16.msra.mxu0 %v402
    %427 = vmatprep.subr.bf16.mxu0 0
    %428 = vmatpush1.bf16.msra.mxu0 0
    %429 = vmatprep.subr.bf16.mxu0 0
    %430 = vmatpush1.bf16.msra.mxu0 0
    %431 = vmatprep.subr.bf16.mxu0 0
    %432 = vmatpush1.bf16.msra.mxu0 0
    %433 = vmatprep.subr.bf16.mxu0 0
    %434 = vmatpush1.bf16.msra.mxu0 0
    %435 = vmatprep.subr.bf16.mxu0 0
    %436 = vmatpush1.bf16.msra.mxu0 0
    %437 = vmatprep.subr.bf16.mxu0 0
    %438 = vmatpush1.bf16.msra.mxu0 0
    %439 = vmatprep.subr.bf16.mxu0 0
    %440 = vmatpush1.bf16.msra.mxu0 0
    %441 = vmatprep.subr.bf16.mxu0 0
    %442 = vmatpush1.bf16.msra.mxu0 0
    %443 = vmatprep.mubr.bf16.mxu0 0
    %444 = vmatmul.mubr.bf16.gmra.mrb[0].mxu0 %v339
    %v445 = vpop.f32.mrb[0].mxu0
    %v446 = vadd.f32 %v361, %v445
    %v447 = vpop.f32.mrb[0].mxu0
    %v448 = vpop.f32.mrb[0].mxu0
    %v449 = vpop.f32.mrb[0].mxu0
    %450 = vdwg.mxu0
    %v451 = vld [vmem:[%s7] sm:$0x1]
    %v452 = vld [vmem:[%s8] sm:$0x1]
    %453 = vmatprep.subr.mxu0 0.0
    %454 = vmatpush1.msra.mxu0 %v97
    %455 = vmatprep.subr.mxu0 0.0
    %456 = vmatpush1.msra.mxu0 %v98
    %457 = vmatprep.subr.mxu0 0.0
    %458 = vmatpush1.msra.mxu0 %v99
    %459 = vmatprep.subr.mxu0 0.0
    %460 = vmatpush1.msra.mxu0 %v100
    %461 = vmatprep.subr.mxu0 0.0
    %462 = vmatpush1.msra.mxu0 %v101
    %463 = vmatprep.subr.mxu0 0.0
    %464 = vmatpush1.msra.mxu0 %v102
    %465 = vmatprep.subr.mxu0 0.0
    %466 = vmatpush1.msra.mxu0 %v103
    %467 = vmatprep.subr.mxu0 0.0
    %468 = vmatpush1.msra.mxu0 %v104
    %469 = vmatprep.subr.mxu0 0.0
    %470 = vmatpush1.msra.mxu0 %v105
    %471 = vmatprep.subr.mxu0 0.0
    %472 = vmatpush1.msra.mxu0 %v106
    %473 = vmatprep.subr.mxu0 0.0
    %474 = vmatpush1.msra.mxu0 %v107
    %475 = vmatprep.subr.mxu0 0.0
    %476 = vmatpush1.msra.mxu0 %v108
    %477 = vmatprep.subr.mxu0 0.0
    %478 = vmatpush1.msra.mxu0 %v109
    %479 = vmatprep.subr.mxu0 0.0
    %480 = vmatpush1.msra.mxu0 %v110
    %481 = vmatprep.subr.mxu0 0.0
    %482 = vmatpush1.msra.mxu0 %v111
    %483 = vmatprep.subr.mxu0 0.0
    %484 = vmatpush1.msra.mxu0 %v112
    %485 = vmatprep.subr.mxu0 0.0
    %486 = vmatpush1.msra.mxu0 0.0
    %487 = vmatprep.subr.mxu0 0.0
    %488 = vmatpush1.msra.mxu0 0.0
    %489 = vmatprep.subr.mxu0 0.0
    %490 = vmatpush1.msra.mxu0 0.0
    %491 = vmatprep.subr.mxu0 0.0
    %492 = vmatpush1.msra.mxu0 0.0
    %493 = vmatprep.subr.mxu0 0.0
    %494 = vmatpush1.msra.mxu0 0.0
    %495 = vmatprep.subr.mxu0 0.0
    %496 = vmatpush1.msra.mxu0 0.0
    %497 = vmatprep.subr.mxu0 0.0
    %498 = vmatpush1.msra.mxu0 0.0
    %499 = vmatprep.subr.mxu0 0.0
    %500 = vmatpush1.msra.mxu0 0.0
    %501 = vmatprep.subr.mxu0 0.0
    %502 = vmatpush1.msra.mxu0 0.0
    %503 = vmatprep.subr.mxu0 0.0
    %504 = vmatpush1.msra.mxu0 0.0
    %505 = vmatprep.subr.mxu0 0.0
    %506 = vmatpush1.msra.mxu0 0.0
    %507 = vmatprep.subr.mxu0 0.0
    %508 = vmatpush1.msra.mxu0 0.0
    %509 = vmatprep.subr.mxu0 0.0
    %510 = vmatpush1.msra.mxu0 0.0
    %511 = vmatprep.subr.mxu0 0.0
    %512 = vmatpush1.msra.mxu0 0.0
    %513 = vmatprep.subr.mxu0 0.0
    %514 = vmatpush1.msra.mxu0 0.0
    %515 = vmatprep.subr.mxu0 0.0
    %516 = vmatpush1.msra.mxu0 0.0
    %517 = vmatprep.mubr.f32.mxu0 0.0
    %518 = vmatmul.mubr.f32.gmra.mrb[0].mxu0 %v446
    %v519 = vpop.f32.mrb[0].mxu0
    %v520 = vadd.f32 0.0, %v519
    %v521 = vpop.f32.mrb[0].mxu0
    %522 = vdwg.mxu0
    %v523 = vmul.f32 %v446, %v446
    %524 = vmatprep.subr.mxu0 0.0
    %525 = vmatpush1.msra.mxu0 %v97
    %526 = vmatprep.subr.mxu0 0.0
    %527 = vmatpush1.msra.mxu0 %v98
    %528 = vmatprep.subr.mxu0 0.0
    %529 = vmatpush1.msra.mxu0 %v99
    %530 = vmatprep.subr.mxu0 0.0
    %531 = vmatpush1.msra.mxu0 %v100
    %532 = vmatprep.subr.mxu0 0.0
    %533 = vmatpush1.msra.mxu0 %v101
    %534 = vmatprep.subr.mxu0 0.0
    %535 = vmatpush1.msra.mxu0 %v102
    %536 = vmatprep.subr.mxu0 0.0
    %537 = vmatpush1.msra.mxu0 %v103
    %538 = vmatprep.subr.mxu0 0.0
    %539 = vmatpush1.msra.mxu0 %v104
    %540 = vmatprep.subr.mxu0 0.0
    %541 = vmatpush1.msra.mxu0 %v105
    %542 = vmatprep.subr.mxu0 0.0
    %543 = vmatpush1.msra.mxu0 %v106
    %544 = vmatprep.subr.mxu0 0.0
    %545 = vmatpush1.msra.mxu0 %v107
    %546 = vmatprep.subr.mxu0 0.0
    %547 = vmatpush1.msra.mxu0 %v108
    %548 = vmatprep.subr.mxu0 0.0
    %549 = vmatpush1.msra.mxu0 %v109
    %550 = vmatprep.subr.mxu0 0.0
    %551 = vmatpush1.msra.mxu0 %v110
    %552 = vmatprep.subr.mxu0 0.0
    %553 = vmatpush1.msra.mxu0 %v111
    %554 = vmatprep.subr.mxu0 0.0
    %555 = vmatpush1.msra.mxu0 %v112
    %556 = vmatprep.subr.mxu0 0.0
    %557 = vmatpush1.msra.mxu0 0.0
    %558 = vmatprep.subr.mxu0 0.0
    %559 = vmatpush1.msra.mxu0 0.0
    %560 = vmatprep.subr.mxu0 0.0
    %561 = vmatpush1.msra.mxu0 0.0
    %562 = vmatprep.subr.mxu0 0.0
    %563 = vmatpush1.msra.mxu0 0.0
    %564 = vmatprep.subr.mxu0 0.0
    %565 = vmatpush1.msra.mxu0 0.0
    %566 = vmatprep.subr.mxu0 0.0
    %567 = vmatpush1.msra.mxu0 0.0
    %568 = vmatprep.subr.mxu0 0.0
    %569 = vmatpush1.msra.mxu0 0.0
    %570 = vmatprep.subr.mxu0 0.0
    %571 = vmatpush1.msra.mxu0 0.0
    %572 = vmatprep.subr.mxu0 0.0
    %573 = vmatpush1.msra.mxu0 0.0
    %574 = vmatprep.subr.mxu0 0.0
    %575 = vmatpush1.msra.mxu0 0.0
    %576 = vmatprep.subr.mxu0 0.0
    %577 = vmatpush1.msra.mxu0 0.0
    %578 = vmatprep.subr.mxu0 0.0
    %579 = vmatpush1.msra.mxu0 0.0
    %580 = vmatprep.subr.mxu0 0.0
    %581 = vmatpush1.msra.mxu0 0.0
    %582 = vmatprep.subr.mxu0 0.0
    %583 = vmatpush1.msra.mxu0 0.0
    %584 = vmatprep.subr.mxu0 0.0
    %585 = vmatpush1.msra.mxu0 0.0
    %586 = vmatprep.subr.mxu0 0.0
    %587 = vmatpush1.msra.mxu0 0.0
    %588 = vmatprep.mubr.f32.mxu0 0.0
    %589 = vmatmul.mubr.f32.gmra.mrb[0].mxu0 %v523
    %v590 = vpop.f32.mrb[0].mxu0
    %v591 = vadd.f32 0.0, %v590
    %v592 = vpop.f32.mrb[0].mxu0
    %593 = vdwg.mxu0
    %v594 = vmul.f32 %v520, 0.0078125
    %v595 = vmul.f32 %v591, 0.0078125
    %v596 = vmul.f32 %v594, %v594
    %v597 = vsub.f32 %v595, %v596
    %v598 = vmax.f32 %v597, 0.0
    %v599 = vsub.f32 %v446, %v594
    %v600 = vadd.f32 %v598, 1e-05
    %v601 = vrsqrt.pop %v600
    %v602 = vmul.f32 %v599, %v601
    %v604 = vlaneseq
    %v605 = vshrl.u32 %v604, 7
    %v606 = vsub.s32 0, %v605
    %v607 = vrot.slane %v451, %v606
    %v609 = vmul.f32 %v602, %v607
    %v611 = vlaneseq
    %v612 = vshrl.u32 %v611, 7
    %v613 = vsub.s32 0, %v612
    %v614 = vrot.slane %v452, %v613
    %v616 = vadd.f32 %v609, %v614
    %v617 = vmax.f32 %v616, 0.0
    %v618 = vpack.c.bf16 %v617, %v617
    %v619 = vld [vmem:[#allocation6] sm:$0xf]
    %v620 = vld [vmem:[#allocation6 + $0x4] sm:$0xf]
    %v621 = vld [vmem:[#allocation6 + $0x8] sm:$0xf]
    %v622 = vld [vmem:[#allocation6 + $0xc] sm:$0xf]
    %v623 = vld [vmem:[#allocation6 + $0x10] sm:$0xf]
    %v624 = vld [vmem:[#allocation6 + $0x14] sm:$0xf]
    %v625 = vld [vmem:[#allocation6 + $0x18] sm:$0xf]
    %v626 = vld [vmem:[#allocation6 + $0x1c] sm:$0xf]
    %v627 = vld [vmem:[#allocation6 + $0x20] sm:$0xf]
    %v628 = vld [vmem:[#allocation6 + $0x24] sm:$0xf]
    %v629 = vld [vmem:[#allocation6 + $0x28] sm:$0xf]
    %v630 = vld [vmem:[#allocation6 + $0x2c] sm:$0xf]
    %v631 = vld [vmem:[#allocation6 + $0x30] sm:$0xf]
    %v632 = vld [vmem:[#allocation6 + $0x34] sm:$0xf]
    %v633 = vld [vmem:[#allocation6 + $0x38] sm:$0xf]
    %v634 = vld [vmem:[#allocation6 + $0x3c] sm:$0xf]
    %v635 = vld [vmem:[%s10] sm:$0x1]
    %v637 = vlaneseq
    %v638 = vshrl.u32 %v637, 7
    %v639 = vsub.s32 0, %v638
    %v640 = vrot.slane %v635, %v639
    %v658 = vunpack.c.l.b16 %v619
    %v659 = vunpack.c.l.b16 %v620
    %v660 = vunpack.c.l.b16 %v621
    %v661 = vunpack.c.l.b16 %v622
    %v662 = vunpack.c.l.b16 %v623
    %v663 = vunpack.c.l.b16 %v624
    %v664 = vunpack.c.l.b16 %v625
    %v665 = vunpack.c.l.b16 %v626
    %v666 = vunpack.c.l.b16 %v627
    %v667 = vunpack.c.l.b16 %v628
    %v668 = vunpack.c.l.b16 %v629
    %v669 = vunpack.c.l.b16 %v630
    %v670 = vunpack.c.l.b16 %v631
    %v671 = vunpack.c.l.b16 %v632
    %v672 = vunpack.c.l.b16 %v633
    %v673 = vunpack.c.l.b16 %v634
    %v674 = vpack.c.b16 %v659, %v658
    %v675 = vpack.c.b16 %v661, %v660
    %v676 = vpack.c.b16 %v663, %v662
    %v677 = vpack.c.b16 %v665, %v664
    %v678 = vpack.c.b16 %v667, %v666
    %v679 = vpack.c.b16 %v669, %v668
    %v680 = vpack.c.b16 %v671, %v670
    %v681 = vpack.c.b16 %v673, %v672
    %690 = vmatprep.subr.bf16.mxu0 0
    %691 = vmatpush1.bf16.msra.mxu0 %v674
    %692 = vmatprep.subr.bf16.mxu0 0
    %693 = vmatpush1.bf16.msra.mxu0 %v675
    %694 = vmatprep.subr.bf16.mxu0 0
    %695 = vmatpush1.bf16.msra.mxu0 %v676
    %696 = vmatprep.subr.bf16.mxu0 0
    %697 = vmatpush1.bf16.msra.mxu0 %v677
    %698 = vmatprep.subr.bf16.mxu0 0
    %699 = vmatpush1.bf16.msra.mxu0 %v678
    %700 = vmatprep.subr.bf16.mxu0 0
    %701 = vmatpush1.bf16.msra.mxu0 %v679
    %702 = vmatprep.subr.bf16.mxu0 0
    %703 = vmatpush1.bf16.msra.mxu0 %v680
    %704 = vmatprep.subr.bf16.mxu0 0
    %705 = vmatpush1.bf16.msra.mxu0 %v681
    %706 = vmatprep.subr.bf16.mxu0 0
    %707 = vmatpush1.bf16.msra.mxu0 0
    %708 = vmatprep.subr.bf16.mxu0 0
    %709 = vmatpush1.bf16.msra.mxu0 0
    %710 = vmatprep.subr.bf16.mxu0 0
    %711 = vmatpush1.bf16.msra.mxu0 0
    %712 = vmatprep.subr.bf16.mxu0 0
    %713 = vmatpush1.bf16.msra.mxu0 0
    %714 = vmatprep.subr.bf16.mxu0 0
    %715 = vmatpush1.bf16.msra.mxu0 0
    %716 = vmatprep.subr.bf16.mxu0 0
    %717 = vmatpush1.bf16.msra.mxu0 0
    %718 = vmatprep.subr.bf16.mxu0 0
    %719 = vmatpush1.bf16.msra.mxu0 0
    %720 = vmatprep.subr.bf16.mxu0 0
    %721 = vmatpush1.bf16.msra.mxu0 0
    %722 = vmatprep.mubr.bf16.mxu0 0
    %723 = vmatmul.mubr.bf16.gmra.mrb[0].mxu0 %v618
    %v724 = vpop.f32.mrb[0].mxu0
    %v725 = vadd.f32 %v640, %v724
    %v726 = vpop.f32.mrb[0].mxu0
    %v727 = vpop.f32.mrb[0].mxu0
    %v728 = vpop.f32.mrb[0].mxu0
    %729 = vdwg.mxu0
    %v730 = vpack.c.bf16 %v725, %v725
    %731 = vst [vmem:[%s12] sm:$0xf] %v730
    // Predicated region
    $region66: #{dqn_forward.1} parent=1 // pred_check
      _
    $region67: #{dqn_forward.1} parent=1 // pred_check_branch
      %733 = sbr.rel (0) target = $region69
    $region68: #{dqn_forward.1} parent=1 // pred_region
      _
    $region69: #{dqn_forward.1} parent=1 // pred_fallthru
      _
    // Predicated region
    $region70: #{dqn_forward.1} parent=1 // pred_check
      _
    $region71: #{dqn_forward.1} parent=1 // pred_check_branch
      %735 = sbr.rel (0) target = $region73
    $region72: #{dqn_forward.1} parent=1 // pred_region
      _
    $region73: #{dqn_forward.1} parent=1 // pred_fallthru
      _
    %736 = vsyncpa [#allocation3], 1
    %737 = vsyncpa [#allocation5], 1
    %738 = vsyncpa [#allocation8], 1

</llo_original>
